<compile_context>
chip_gen: v6e
topology: v6e:2x2x1
jax: 0.10.0
libtpu: 0.0.40
codegen_flags: <defaults>
</compile_context>

<pallas_src>
import math

import jax
import jax.numpy as jnp
from jax.experimental import pallas as pl
from jax.experimental.pallas import tpu as pltpu


def _round_up(x, m):
    return ((x + m - 1) // m) * m


def _combined_lm_kernel(h_ref, wc_ref, bc_ref, out_ref):
    """One MXU matmul for both lm-heads + stable gated log-mixture epilogue.

    h_ref:  (tm, D)      bf16
    wc_ref: (D, 2*tn)    bf16   [model1 cols | model2 cols]
    bc_ref: (1, 2*tn)    f32    biases with log(gate)/log(1-gate) folded in
    out_ref:(tm, tn)
    """
    tn = out_ref.shape[1]
    logits = jnp.dot(h_ref[...], wc_ref[...],
                     preferred_element_type=jnp.float32) + bc_ref[...]
    a = logits[:, :tn]          # logits1 + log(gate)
    b = logits[:, tn:]          # logits2 + log(1 - gate)
    # log(exp(a) + exp(b)) with a single exp.
    out = jnp.maximum(a, b) + jnp.log1p(jnp.exp(-jnp.abs(a - b)))
    out_ref[...] = out.astype(out_ref.dtype)


def prepare_combined_lm_head(w1, b1, w2, b2, gate_prob, *, tn=1024):
    """One-time weight preparation (call at weight-load time, reuse per forward).

    w_i: (D, V) lm-head weights; b_i: (1, V) biases; gate_prob: python float.
    Tile-interleaves W1/W2 along V so one (D, 2*tn) MXU matmul per vocab tile
    yields both models' logits, casts weights to bf16, and folds
    log(gate)/log(1-gate) into the f32 biases.
    """
    D, V = w1.shape
    tn = min(tn, _round_up(V, 128))          # lane-dense vocab tiles
    Vp = _round_up(V, tn)
    nvt = Vp // tn

    if Vp != V:
        pad = Vp - V
        w1 = jnp.pad(w1, ((0, 0), (0, pad)))
        w2 = jnp.pad(w2, ((0, 0), (0, pad)))
        b1 = jnp.pad(b1, ((0, 0), (0, pad)))
        b2 = jnp.pad(b2, ((0, 0), (0, pad)))

    # Clamp so log(gate)/log(1-gate) stay finite (gate_prob of exactly 0 or 1).
    g = min(max(float(gate_prob), 1e-30), 1.0 - 1e-7)
    log_g = math.log(g)
    log_1mg = math.log1p(-g)

    # (nvt, D, 2*tn): vocab-tile j holds [W1 tile j | W2 tile j].
    w1t = w1.reshape(D, nvt, tn).transpose(1, 0, 2)
    w2t = w2.reshape(D, nvt, tn).transpose(1, 0, 2)
    wc = jnp.concatenate([w1t, w2t], axis=2).astype(jnp.bfloat16)

    # (nvt, 1, 2*tn) f32 biases with the log-gates folded in.
    b1t = b1.reshape(nvt, 1, tn).astype(jnp.float32) + jnp.float32(log_g)
    b2t = b2.reshape(nvt, 1, tn).astype(jnp.float32) + jnp.float32(log_1mg)
    bc = jnp.concatenate([b1t, b2t], axis=2)

    return {"wc": wc, "bc": bc, "tn": tn, "V": V, "Vp": Vp, "nvt": nvt, "D": D}


def bart_combined_logits(h_flat, prepared, *, tm=256, out_dtype=jnp.float32):
    """h_flat: (M, D) decoder hidden states. Returns (M, V) combined lm_logits."""
    M, D = h_flat.shape
    wc, bc = prepared["wc"], prepared["bc"]
    tn, V, Vp, nvt = prepared["tn"], prepared["V"], prepared["Vp"], prepared["nvt"]
    assert prepared["D"] == D

    tm = min(tm, _round_up(M, 16))           # bf16 sublane packing
    Mp = _round_up(M, tm)
    nmt = Mp // tm
    if Mp != M:
        h_flat = jnp.pad(h_flat, ((0, Mp - M), (0, 0)))
    h_bf = h_flat.astype(jnp.bfloat16)

    # At decode (single M tile) every grid step swaps the large weight block;
    # deepen its buffering to hide DMA turnaround.
    w_buffers = 3 if (nmt == 1 and nvt > 2) else 2
    w_block = (None, D, 2 * tn)
    w_index = lambda j, i: (j, 0, 0)
    if w_buffers == 2:
        w_spec = pl.BlockSpec(w_block, w_index)
    else:
        w_spec = pl.BlockSpec(w_block, w_index, pipeline_mode=pl.Buffered(w_buffers))

    # VMEM budget from the actual tile footprint, clamped for v7x (64 MiB phys).
    need = (w_buffers * D * (2 * tn) * 2          # bf16 weight tiles
            + 2 * tm * D * 2                      # bf16 hidden tiles
            + 2 * (2 * tn) * 4                    # f32 bias tiles
            + 2 * tm * tn * 4                     # output tiles
            + tm * (2 * tn) * 4)                  # f32 (tm, 2tn) intermediate
    vmem_bytes = min(max(int(need * 1.5), 32 * 1024 * 1024), 48 * 1024 * 1024)

    out = pl.pallas_call(
        _combined_lm_kernel,
        out_shape=jax.ShapeDtypeStruct((Mp, Vp), out_dtype),
        grid_spec=pl.GridSpec(
            # V tiles outer, M tiles innermost: the (D, 2*tn) weight/bias
            # blocks keep a constant index over the inner sweep and stay
            # VMEM-resident; only the small hidden tile is re-DMA'd.
            grid=(nvt, nmt),
            in_specs=[
                pl.BlockSpec((tm, D), lambda j, i: (i, 0)),          # hidden rows
                w_spec,                                               # fused weights
                pl.BlockSpec((None, 1, 2 * tn), lambda j, i: (j, 0, 0)),  # fused biases
            ],
            out_specs=pl.BlockSpec((tm, tn), lambda j, i: (i, j)),
        ),
        compiler_params=pltpu.CompilerParams(
            # Shard only the vocab axis across TensorCores (v7x megacore) so the
            # two cores stream disjoint halves of the weights; M stays arbitrary.
            dimension_semantics=("parallel", "arbitrary"),
            vmem_limit_bytes=vmem_bytes,
        ),
    )(h_bf, wc, bc)

    # Padded rows/cols carry finite garbage; always slice them off.
    return out[:M, :V]


if __name__ == "__main__":
    # Small shapes implied by the forward: batch=2, decoder seq=8, hidden=32, vocab=128.
    B, T, D, V = 2, 8, 32, 128
    gate_prob = 0.5

    key = jax.random.PRNGKey(0)
    k1, k2, k3, k4, k5 = jax.random.split(key, 5)

    # Deterministic synthetic parameters / activations (no checkpoint loading).
    h = jax.random.normal(k1, (B, T, D), dtype=jnp.float32) * 0.5   # shared decoder hidden
    w1 = jax.random.normal(k2, (D, V), dtype=jnp.float32) * 0.1      # model1 lm_head weight
    b1 = jax.random.normal(k3, (1, V), dtype=jnp.float32) * 0.1      # model1 lm_head bias
    w2 = jax.random.normal(k4, (D, V), dtype=jnp.float32) * 0.1      # model2 lm_head weight
    b2 = jax.random.normal(k5, (1, V), dtype=jnp.float32) * 0.1      # model2 lm_head bias

    # One-time weight prep (cached in real use), then the per-forward kernel call.
    prepared = prepare_combined_lm_head(w1, b1, w2, b2, gate_prob)
    h_flat = h.reshape(B * T, D)
    lm_logits = bart_combined_logits(h_flat, prepared).reshape(B, T, V)
    jax.block_until_ready(lm_logits)

    # Pure-JAX reference of the module semantics (same bf16-rounded matmul
    # inputs as the kernel so the comparison isolates the kernel math).
    h32 = h_flat.astype(jnp.bfloat16).astype(jnp.float32)
    w1_32 = w1.astype(jnp.bfloat16).astype(jnp.float32)
    w2_32 = w2.astype(jnp.bfloat16).astype(jnp.float32)
    logits1 = h32 @ w1_32 + b1
    logits2 = h32 @ w2_32 + b2
    ref = jnp.logaddexp(logits1 + jnp.log(jnp.float32(gate_prob)),
                        logits2 + jnp.log(jnp.float32(1.0 - gate_prob)))
    ref = ref.reshape(B, T, V)

    assert lm_logits.shape == (B, T, V)
    assert bool(jnp.all(jnp.isfinite(lm_logits))), "non-finite output"
    assert bool(jnp.allclose(lm_logits, ref, atol=1e-4, rtol=1e-4)), "mismatch vs reference"
    print("KERNEL_OK")
</pallas_src>

<mosaic_0001>
module attributes {stable_mosaic.version = 11 : i64} {
  func.func @_combined_lm_kernel(%arg0: i32, %arg1: i32, %arg2: memref<16x32xbf16, #tpu.memory_space<vmem>>, %arg3: memref<1x32x256xbf16, #tpu.memory_space<vmem>>, %arg4: memref<1x1x256xf32, #tpu.memory_space<vmem>>, %arg5: memref<16x128xf32, #tpu.memory_space<vmem>>) attributes {dimension_semantics = [#tpu.dimension_semantics<parallel>, #tpu.dimension_semantics<arbitrary>], iteration_bounds = array<i64: 1, 1>, scalar_prefetch = 0 : i64, scratch_operands = 0 : i64, tpu.core_type = #tpu.core_type<tc>, window_params = [{transform_indices = @transform_0, window_bounds = array<i64: 16, 32>}, {transform_indices = @transform_1, window_bounds = array<i64: 1, 32, 256>}, {transform_indices = @transform_2, window_bounds = array<i64: 1, 1, 256>}, {transform_indices = @transform_3, window_bounds = array<i64: 16, 128>}]} {
    %c0 = arith.constant 0 : index
    %c0_0 = arith.constant 0 : index
    %0 = vector.load %arg2[%c0, %c0_0] : memref<16x32xbf16, #tpu.memory_space<vmem>>, vector<16x32xbf16>
    %c0_1 = arith.constant 0 : index
    %c0_2 = arith.constant 0 : index
    %c0_3 = arith.constant 0 : index
    %1 = vector.load %arg3[%c0_1, %c0_2, %c0_3] : memref<1x32x256xbf16, #tpu.memory_space<vmem>>, vector<1x32x256xbf16>
    %2 = vector.shape_cast %1 : vector<1x32x256xbf16> to vector<32x256xbf16>
    %cst = arith.constant dense<0.000000e+00> : vector<16x256xf32>
    %3 = tpu.matmul %0, %2, %cst {dimension_numbers = #tpu.dot_dimension_numbers<[1], [0], [0], [1], [0, 0, 1, 1], [], []>} : vector<16x32xbf16>, vector<32x256xbf16>, vector<16x256xf32> -> vector<16x256xf32>
    %c0_4 = arith.constant 0 : index
    %c0_5 = arith.constant 0 : index
    %c0_6 = arith.constant 0 : index
    %4 = vector.load %arg4[%c0_4, %c0_5, %c0_6] : memref<1x1x256xf32, #tpu.memory_space<vmem>>, vector<1x1x256xf32>
    %5 = vector.shape_cast %4 : vector<1x1x256xf32> to vector<1x256xf32>
    %6 = vector.broadcast %5 : vector<1x256xf32> to vector<16x256xf32>
    %7 = arith.addf %3, %6 : vector<16x256xf32>
    %8 = vector.extract_strided_slice %7 {offsets = [0, 0], sizes = [16, 128], strides = [1, 1]} : vector<16x256xf32> to vector<16x128xf32>
    %9 = vector.extract_strided_slice %7 {offsets = [0, 128], sizes = [16, 128], strides = [1, 1]} : vector<16x256xf32> to vector<16x128xf32>
    %10 = arith.maximumf %8, %9 : vector<16x128xf32>
    %11 = arith.subf %8, %9 : vector<16x128xf32>
    %12 = math.absf %11 : vector<16x128xf32>
    %cst_7 = arith.constant 0.000000e+00 : f32
    %13 = vector.broadcast %cst_7 : f32 to vector<16x128xf32>
    %14 = arith.subf %13, %12 : vector<16x128xf32>
    %15 = math.exp %14 : vector<16x128xf32>
    %16 = math.log1p %15 : vector<16x128xf32>
    %17 = arith.addf %10, %16 : vector<16x128xf32>
    %c0_8 = arith.constant 0 : index
    %c0_9 = arith.constant 0 : index
    %18 = vector.load %arg5[%c0_8, %c0_9] : memref<16x128xf32, #tpu.memory_space<vmem>>, vector<16x128xf32>
    tpu.vector_store %arg5[%c0_8, %c0_9], %17 {strides = array<i32>} : memref<16x128xf32, #tpu.memory_space<vmem>>, vector<16x128xf32>,
    return
  }
  func.func @transform_0(%arg0: i32, %arg1: i32) -> (i32, i32) {
    %c0_i32 = arith.constant 0 : i32
    %c0_i32_0 = arith.constant 0 : i32
    return %arg1, %c0_i32 : i32, i32
  }
  func.func @transform_1(%arg0: i32, %arg1: i32) -> (i32, i32, i32) {
    %c0_i32 = arith.constant 0 : i32
    %c0_i32_0 = arith.constant 0 : i32
    %c0_i32_1 = arith.constant 0 : i32
    return %arg0, %c0_i32, %c0_i32_0 : i32, i32, i32
  }
  func.func @transform_2(%arg0: i32, %arg1: i32) -> (i32, i32, i32) {
    %c0_i32 = arith.constant 0 : i32
    %c0_i32_0 = arith.constant 0 : i32
    %c0_i32_1 = arith.constant 0 : i32
    return %arg0, %c0_i32, %c0_i32_0 : i32, i32, i32
  }
  func.func @transform_3(%arg0: i32, %arg1: i32) -> (i32, i32) {
    %c0_i32 = arith.constant 0 : i32
    return %arg1, %arg0 : i32, i32
  }
}

</mosaic_0001>

<llo_original>
// kernel: tpu_custom_call.1
$region0: #{tpu_custom_call.1}
  #allocation0 [shape = 'u32[]', space=smem, size = 0x4, offset = 0x4, fixed_abs, tag = 'smem constant byte address 0x4 - core index']
  #allocation1 [shape = 'u32[144,128]{1,0:T(1,128)}', space=vmem, size = 0x12000, scoped, tag = 'internal scratch']
  %s0 = inlined_call_operand.hbm [shape: bf16[16,32], index: 0, kind: input, shape index: {}]
  %s1 = inlined_call_operand.hbm [shape: bf16[1,32,256], index: 1, kind: input, shape index: {}]
  %s2 = inlined_call_operand.vmem [shape: f32[1,1,256], index: 2, kind: input, shape index: {}]
  %s3 = inlined_call_operand.hbm [shape: f32[16,128], index: 3, kind: output, shape index: {}]
  %s4 = sld [smem:[#allocation0]]
  $region30: #{tpu_custom_call.1} parent=0
    _
  %s6 = ssub.s32 1, %s4
  %s7 = scalar_select 0, %s6, %s4
  $region1: #{tpu_custom_call.1} parent=0
    #allocation2 [shape = 'u8[4096]{0}', space=vmem, size = 0x1000, scoped, tag = 'input window, operand 0, single buffered']
    #allocation3 [shape = 's32[1]{0}', space=sflag, size = 0x4, scoped, tag = 'scoped memory for tpu_custom_call.1']
    #allocation4 [shape = 's32[1]{0}', space=sflag, size = 0x4, scoped, tag = 'scoped memory for tpu_custom_call.1']
    #allocation5 [shape = 'u8[16384]{0}', space=vmem, size = 0x4000, scoped, tag = 'input window, operand 1, single buffered']
    #allocation6 [shape = 's32[1]{0}', space=sflag, size = 0x4, scoped, tag = 'scoped memory for tpu_custom_call.1']
    #allocation7 [shape = 'u8[8192]{0}', space=vmem, size = 0x2000, scoped, tag = 'output window, operand 0, single buffered']
    %8 = vsyncpa [#allocation3], 0
    %9 = vsyncpa [#allocation6], 0
    %10 = vsyncpa [#allocation4], 0
    // Predicated region
    $region2: #{tpu_custom_call.1} parent=1 // pred_check
      _
    $region3: #{tpu_custom_call.1} parent=1 // pred_check_branch
      %12 = sbr.rel (0) target = $region5
    $region4: #{tpu_custom_call.1} parent=1 // pred_region
      %s14 = ssub.s32 128, 128
      %15 = vsyncadd [#allocation3], %s14
      %s16 = sshll.u32 [#allocation2], 4
      %s17 = int_to_ptr.vmem [resolvable:$true] %s16
      %22 = dma.hbm_to_vmem [thread:$0]  %s0, 128, %s17, [#allocation3], 64, 64, 4
    $region5: #{tpu_custom_call.1} parent=1 // pred_fallthru
      _
    // Predicated region
    $region6: #{tpu_custom_call.1} parent=1 // pred_check
      _
    $region7: #{tpu_custom_call.1} parent=1 // pred_check_branch
      %24 = sbr.rel (0) target = $region9
    $region8: #{tpu_custom_call.1} parent=1 // pred_region
      %s26 = ssub.s32 512, 512
      %27 = vsyncadd [#allocation6], %s26
      %s28 = sshll.u32 [#allocation5], 4
      %s29 = int_to_ptr.vmem [resolvable:$true] %s28
      %34 = dma.hbm_to_vmem [thread:$0]  %s1, 512, %s29, [#allocation6], 128, 128, 8
    $region9: #{tpu_custom_call.1} parent=1 // pred_fallthru
      _
    // Predicated region
    $region10: #{tpu_custom_call.1} parent=1 // pred_check
      _
    $region11: #{tpu_custom_call.1} parent=1 // pred_check_branch
      %36 = sbr.rel (0) target = $region13
    $region12: #{tpu_custom_call.1} parent=1 // pred_region
      _
    $region13: #{tpu_custom_call.1} parent=1 // pred_fallthru
      _
    // Predicated region
    $region14: #{tpu_custom_call.1} parent=1 // pred_check
      _
    $region15: #{tpu_custom_call.1} parent=1 // pred_check_branch
      %38 = sbr.rel (0) target = $region17
    $region16: #{tpu_custom_call.1} parent=1 // pred_region
      %39 = dma.done [#allocation3], 128
    $region17: #{tpu_custom_call.1} parent=1 // pred_fallthru
      _
    // Predicated region
    $region18: #{tpu_custom_call.1} parent=1 // pred_check
      _
    $region19: #{tpu_custom_call.1} parent=1 // pred_check_branch
      %41 = sbr.rel (0) target = $region21
    $region20: #{tpu_custom_call.1} parent=1 // pred_region
      %42 = dma.done [#allocation6], 512
    $region21: #{tpu_custom_call.1} parent=1 // pred_fallthru
      _
    %v44 = vld [vmem:[#allocation2] sm:$0xf]
    %v45 = vld [vmem:[#allocation2 + $0x4] sm:$0xf]
    %v46 = vld [vmem:[#allocation5] sm:$0xff]
    %v47 = vld [vmem:[#allocation5 + $0x8] sm:$0xff]
    %v48 = vld [vmem:[#allocation5 + $0x10] sm:$0xff]
    %v49 = vld [vmem:[#allocation5 + $0x18] sm:$0xff]
    %v50 = vld [vmem:[%s2] sm:$0x3]
    %v52 = vlaneseq
    %v53 = vshrl.u32 %v52, 7
    %v54 = vsub.s32 0, %v53
    %v55 = vrot.slane %v50, %v54
    %v56 = vlaneseq
    %v57 = vshrl.u32 %v56, 7
    %v58 = vsub.s32 1, %v57
    %v59 = vrot.slane %v50, %v58
    %v64 = vunpack.c.l.b16 %v44
    %v65 = vunpack.c.l.b16 %v45
    %v66 = vpack.c.b16 %v65, %v64
    %v71 = vunpack.c.l.b16 %v46
    %v72 = vunpack.c.h.b16 %v46
    %v73 = vunpack.c.l.b16 %v47
    %v74 = vunpack.c.h.b16 %v47
    %v75 = vunpack.c.l.b16 %v48
    %v76 = vunpack.c.h.b16 %v48
    %v77 = vunpack.c.l.b16 %v49
    %v78 = vunpack.c.h.b16 %v49
    %v79 = vpack.c.b16 %v73, %v71
    %v80 = vpack.c.b16 %v74, %v72
    %v81 = vpack.c.b16 %v77, %v75
    %v82 = vpack.c.b16 %v78, %v76
    %vm87 = vcmask 261120
    %v89 = vsel %vm87, %v66, 0
    %91 = vmatprep.subr.bf16.mxu0 0
    %92 = vmatpush1.bf16.msra.mxu0 0
    %93 = vmatprep.subr.bf16.mxu0 0
    %94 = vmatpush1.bf16.msra.mxu0 0
    %95 = vmatprep.subr.bf16.mxu0 0
    %96 = vmatpush1.bf16.msra.mxu0 0
    %97 = vmatprep.subr.bf16.mxu0 0
    %98 = vmatpush1.bf16.msra.mxu0 0
    %99 = vmatprep.subr.bf16.mxu0 0
    %100 = vmatpush1.bf16.msra.mxu0 0
    %101 = vmatprep.subr.bf16.mxu0 0
    %102 = vmatpush1.bf16.msra.mxu0 0
    %103 = vmatprep.subr.bf16.mxu0 %v82
    %104 = vmatpush1.bf16.msra.mxu0 %v81
    %105 = vmatprep.subr.bf16.mxu0 %v80
    %106 = vmatpush1.bf16.msra.mxu0 %v79
    %107 = vmatprep.subr.bf16.mxu0 0
    %108 = vmatpush2.bf16.msra.mxu0 0
    %109 = vmatprep.subr.bf16.mxu0 0
    %110 = vmatpush2.bf16.msra.mxu0 0
    %111 = vmatprep.subr.bf16.mxu0 0
    %112 = vmatpush2.bf16.msra.mxu0 0
    %113 = vmatprep.subr.bf16.mxu0 0
    %114 = vmatpush2.bf16.msra.mxu0 0
    %115 = vmatprep.subr.bf16.mxu0 0
    %116 = vmatpush2.bf16.msra.mxu0 0
    %117 = vmatprep.subr.bf16.mxu0 0
    %118 = vmatpush2.bf16.msra.mxu0 0
    %119 = vmatprep.subr.bf16.mxu0 0
    %120 = vmatpush2.bf16.msra.mxu0 0
    %121 = vmatprep.subr.bf16.mxu0 0
    %122 = vmatpush2.bf16.msra.mxu0 0
    %123 = vmatprep.mubr.bf16.mxu0 0
    %124 = vmatmul.mubr.bf16.gmra.mxu0 %v89
    %v125 = vpop.f32.mrf.mxu0
    %v126 = vadd.f32 %v55, %v125
    %v127 = vpop.f32.mrf.mxu0
    %v128 = vadd.f32 %v59, %v127
    %v129 = vpop.f32.mrf.mxu0
    %v130 = vadd.f32 %v55, %v129
    %v131 = vpop.f32.mrf.mxu0
    %v132 = vadd.f32 %v59, %v131
    %133 = vdwg.mxu0
    %v134 = vmax.f32 %v126, %v128
    %v135 = vmax.f32 %v130, %v132
    %v136 = vsub.f32 %v126, %v128
    %v137 = vsub.f32 %v130, %v132
    %v138 = vand.u32 2147483647, %v136
    %v139 = vand.u32 2147483647, %v137
    %v140 = vsub.f32 0.0, %v138
    %v141 = vsub.f32 0.0, %v139
    %v142 = vmul.f32 %v140, 1.442695
    %v143 = vpow.pop %v142
    %v144 = vmul.f32 %v141, 1.442695
    %v145 = vpow.pop %v144
    %v146 = vadd.f32 %v143, 1.0
    %v147 = vlog2.pop %v146
    %v148 = vmul.f32 %v147, 0.6931472
    %v149 = vmul.f32 -0.5, %v143
    %v150 = vadd.f32 %v149, 1.0
    %v151 = vmul.f32 %v150, %v143
    %v152 = vand.u32 2147483647, %v143
    %vm153 = vcmp.lt.f32.partialorder %v152, 0.0004427343
    %v154 = vsel %vm153, %v151, %v148
    %v155 = vadd.f32 %v145, 1.0
    %v156 = vlog2.pop %v155
    %v157 = vmul.f32 %v156, 0.6931472
    %v158 = vmul.f32 -0.5, %v145
    %v159 = vadd.f32 %v158, 1.0
    %v160 = vmul.f32 %v159, %v145
    %v161 = vand.u32 2147483647, %v145
    %vm162 = vcmp.lt.f32.partialorder %v161, 0.0004427343
    %v163 = vsel %vm162, %v160, %v157
    %v164 = vadd.f32 %v134, %v154
    %v165 = vadd.f32 %v135, %v163
    %166 = vst [vmem:[#allocation7] sm:$0xff] %v164
    %167 = vst [vmem:[#allocation7 + $0x8] sm:$0xff] %v165
    // Predicated region
    $region22: #{tpu_custom_call.1} parent=1 // pred_check
      _
    $region23: #{tpu_custom_call.1} parent=1 // pred_check_branch
      %169 = sbr.rel (0) target = $region25
    $region24: #{tpu_custom_call.1} parent=1 // pred_region
      %s171 = ssub.s32 256, 256
      %172 = vsyncadd [#allocation4], %s171
      %s173 = sshll.u32 [#allocation7], 4
      %s174 = int_to_ptr.vmem [resolvable:$true] %s173
      %179 = dma.vmem_to_hbm [thread:$0]  %s174, 256, %s3, [#allocation4], 128, 128, 8
    $region25: #{tpu_custom_call.1} parent=1 // pred_fallthru
      _
    // Predicated region
    $region26: #{tpu_custom_call.1} parent=1 // pred_check
      _
    $region27: #{tpu_custom_call.1} parent=1 // pred_check_branch
      %181 = sbr.rel (0) target = $region29
    $region28: #{tpu_custom_call.1} parent=1 // pred_region
      %182 = dma.done [#allocation4], 256
    $region29: #{tpu_custom_call.1} parent=1 // pred_fallthru
      _
    %183 = vsyncpa [#allocation3], 1
    %184 = vsyncpa [#allocation6], 1
    %185 = vsyncpa [#allocation4], 1

</llo_original>
